<compile_context>
chip_gen: v5e
topology: v5e:2x2
jax: 0.10.0
libtpu: 0.0.40
codegen_flags: <defaults>
</compile_context>

<pallas_src>
import functools

import jax
import jax.numpy as jnp
from jax.experimental import pallas as pl
from jax.experimental.pallas import tpu as pltpu

INPUT_SIZE = 16
HIDDEN_SIZE = 32

_PARAM_ORDER = ('fg', 'in', 'out', 'ci', 'gi', 'gh', 'bg')


def smlstm_kernel(x_ref, h0_ref, c0_ref, w_ref, out_ref, h_sc, c_sc, *,
                  input_size, hidden_size):
    """One grid step == one SMLSTM cell step (the time axis is the grid).

    x_ref    : (1, B, I)      this step's input rows
    h0_ref   : (B, H)         initial hidden state (read only at t == 0)
    c0_ref   : (B, H)         initial cell state   (read only at t == 0)
    w_ref    : (I+H+1, Npad)  packed weight slab + bias row; constant index_map
                              -> DMA'd once, VMEM-resident for all T steps
    out_ref  : (1, B, 2H)     [ output | new_cell_state ] for this step
    h_sc/c_sc: (B, H) f32     VMEM scratch carrying the recurrent state
    """
    i, h = input_size, hidden_size
    t = pl.program_id(0)

    @pl.when(t == 0)
    def _():
        h_sc[...] = h0_ref[...]
        c_sc[...] = c0_ref[...]

    x = x_ref[0]                       # (B, I)  float32
    h_prev = h_sc[...]                 # (B, H)  float32
    c_prev = c_sc[...]                 # (B, H)  float32
    b = x.shape[0]

    # --- ONE MXU matmul for every affine head; bias folded in via the
    #     constant-1 column of xh1 and the last row of the slab. ---
    ones = jnp.ones((b, 1), dtype=x.dtype)
    xh1 = jnp.concatenate([x, h_prev, ones], axis=-1)            # (B, I+H+1)
    z = jnp.dot(xh1.astype(w_ref.dtype), w_ref[...],
                preferred_element_type=jnp.float32)              # (B, Npad) f32

    # Packed column layout (all segment starts 128-lane aligned for H=32):
    #   [ fg(H) | in(H) | out(H) | ci(H) | gi_flat(H*I) | gh_flat(H*H) | bgen(H) | pad ]
    gi0 = 4 * h
    gh0 = gi0 + h * i
    bg0 = gh0 + h * h

    gates = jax.nn.sigmoid(z[:, 0:3 * h])        # fg|in|out in one EUP dispatch
    fg = gates[:, 0:h]
    ig = gates[:, h:2 * h]
    og = gates[:, 2 * h:3 * h]
    ci = jnp.tanh(z[:, 3 * h:4 * h])
    gen_bias = z[:, bg0:bg0 + h]

    # Generated-weight application: x @ gen_inpt_w.T + h @ gen_hidden_w.T where
    # gen_*_w is the row-major reshape of the flat generated weights.  Done as
    # reshape + broadcast multiply + lane reduction -- no mask matmul, no
    # in-kernel iota/compare mask build, no `tiled` HBM input.
    gi_w = z[:, gi0:gh0].reshape(b, h, i)        # [b, j, k] = flat[j*I + k]
    gh_w = z[:, gh0:bg0].reshape(b, h, h)        # [b, j, k] = flat[j*H + k]
    sm_pre = (jnp.sum(gi_w * x[:, None, :], axis=-1)
              + jnp.sum(gh_w * h_prev[:, None, :], axis=-1)
              + gen_bias)                        # (B, H)
    sm_out = jax.nn.sigmoid(sm_pre)

    new_c = fg * sm_out * c_prev + ig * ci
    out = og * jnp.tanh(new_c)
    # TODO(synk): nn.Dropout is treated as identity (eval-mode semantics);
    # training-mode parity would need pltpu.prng_* masking here.

    h_sc[...] = out
    c_sc[...] = new_c
    out_ref[0] = jnp.concatenate([out, new_c], axis=-1)   # one (B, 2H) store


def pack_params(params, input_size=INPUT_SIZE, hidden_size=HIDDEN_SIZE,
                weight_dtype=jnp.float32, pad_to=256):
    """Pack all 21 parameters into one (I+H+1, Npad) slab.

    Rows 0..I-1   : input-weight rows  (wi.T)
    Rows I..I+H-1 : hidden-weight rows (wh.T)
    Row  I+H      : bias row (matched by the constant-1 column of xh1)
    Columns padded with zeros to a multiple of `pad_to` (256: no masked MXU
    tail tile on v6e/v7x; 1696 -> 1792 is also 128-aligned for v5e).
    """
    f32 = jnp.float32
    wx = jnp.concatenate([jnp.asarray(params[k + '_wi'], f32).T for k in _PARAM_ORDER], axis=1)
    wh = jnp.concatenate([jnp.asarray(params[k + '_wh'], f32).T for k in _PARAM_ORDER], axis=1)
    bb = jnp.concatenate([jnp.asarray(params[k + '_b'], f32) for k in _PARAM_ORDER]).reshape(1, -1)
    w = jnp.concatenate([wx, wh, bb], axis=0)                   # (I+H+1, total)
    total = w.shape[1]
    n_pad = ((total + pad_to - 1) // pad_to) * pad_to
    if n_pad != total:
        w = jnp.pad(w, ((0, 0), (0, n_pad - total)))
    return w.astype(weight_dtype)


def smlstm_scan(packed_w, x_seq, cell_state0, hidden_state0,
                input_size=INPUT_SIZE, hidden_size=HIDDEN_SIZE):
    """Run the cell over a (T, B, I) input sequence inside ONE pallas_call.

    h_{t+1} = out_t and c_{t+1} = new_c_t, i.e. exactly T successive calls of
    the PyTorch module's forward.  Returns (out_seq, new_c_seq), both (T,B,H).
    """
    f32 = jnp.float32
    t_steps, batch, i = x_seq.shape
    h = hidden_size
    assert i == input_size

    x_seq = jnp.asarray(x_seq, f32)
    h0 = jnp.asarray(hidden_state0, f32).reshape(batch, h)
    c0 = jnp.asarray(cell_state0, f32).reshape(batch, h)

    kernel = functools.partial(smlstm_kernel, input_size=i, hidden_size=h)
    packed = pl.pallas_call(
        kernel,
        out_shape=jax.ShapeDtypeStruct((t_steps, batch, 2 * h), f32),
        grid_spec=pltpu.PrefetchScalarGridSpec(
            num_scalar_prefetch=0,
            grid=(t_steps,),
            in_specs=[
                pl.BlockSpec((1, batch, i), lambda t: (t, 0, 0)),   # x_t
                pl.BlockSpec((batch, h), lambda t: (0, 0)),         # h0 (DMA once)
                pl.BlockSpec((batch, h), lambda t: (0, 0)),         # c0 (DMA once)
                pl.BlockSpec(packed_w.shape, lambda t: (0, 0)),     # weights (DMA once)
            ],
            out_specs=pl.BlockSpec((1, batch, 2 * h), lambda t: (t, 0, 0)),
            scratch_shapes=[pltpu.VMEM((batch, h), f32),            # h carry
                            pltpu.VMEM((batch, h), f32)],           # c carry
        ),
        compiler_params=pltpu.CompilerParams(
            # time axis carries state in scratch -> must stay sequential
            dimension_semantics=("arbitrary",)),
        # TODO(synk): for very large B on v7x, add a "parallel" batch grid axis
        # (engages both TensorCores) and set vmem_limit_bytes explicitly.
    )(x_seq, h0, c0, packed_w)

    return packed[:, :, :h], packed[:, :, h:]


def smlstm_forward(packed_w, x, cell_state, hidden_state,
                   input_size=INPUT_SIZE, hidden_size=HIDDEN_SIZE):
    """Single un-batched step; exact semantics of SMLSTM.forward."""
    out_seq, c_seq = smlstm_scan(
        packed_w, jnp.asarray(x, jnp.float32).reshape(1, 1, input_size),
        cell_state, hidden_state, input_size=input_size, hidden_size=hidden_size)
    out = out_seq[0, 0]
    new_c = c_seq[0, 0]
    return out, new_c, out   # module returns (output, new_cell_state, output)


def make_params(input_size, hidden_size, dtype=jnp.float32):
    """Matches the PyTorch __init__ exactly: weights uniform_(a=1/in_features,
    b=1/in_features) == 1/in_features; biases of length n filled with 1/n."""
    i, h = input_size, hidden_size

    def w(out_s, in_s):
        return jnp.full((out_s, in_s), 1.0 / in_s, dtype)

    def b(n):
        return jnp.full((n,), 1.0 / n, dtype)

    return dict(
        fg_wi=w(h, i), fg_wh=w(h, h), fg_b=b(h),
        in_wi=w(h, i), in_wh=w(h, h), in_b=b(h),
        out_wi=w(h, i), out_wh=w(h, h), out_b=b(h),
        ci_wi=w(h, i), ci_wh=w(h, h), ci_b=b(h),
        gi_wi=w(h * i, i), gi_wh=w(h * i, h), gi_b=b(h * i),
        gh_wi=w(h * h, i), gh_wh=w(h * h, h), gh_b=b(h * h),
        bg_wi=w(h, i), bg_wh=w(h, h), bg_b=b(h),
    )


def make_random_params(key, input_size=INPUT_SIZE, hidden_size=HIDDEN_SIZE, dtype=jnp.float32):
    """Random params: validates the flat-index -> (H,I)/(H,H) reshape mapping."""
    i, h = input_size, hidden_size
    shapes = dict(
        fg_wi=(h, i), fg_wh=(h, h), fg_b=(h,),
        in_wi=(h, i), in_wh=(h, h), in_b=(h,),
        out_wi=(h, i), out_wh=(h, h), out_b=(h,),
        ci_wi=(h, i), ci_wh=(h, h), ci_b=(h,),
        gi_wi=(h * i, i), gi_wh=(h * i, h), gi_b=(h * i,),
        gh_wi=(h * h, i), gh_wh=(h * h, h), gh_b=(h * h,),
        bg_wi=(h, i), bg_wh=(h, h), bg_b=(h,),
    )
    keys = jax.random.split(key, len(shapes))
    return {name: 0.1 * jax.random.normal(k, shp, dtype)
            for k, (name, shp) in zip(keys, shapes.items())}


def smlstm_reference(params, x, cell_state, hidden_state,
                     input_size=INPUT_SIZE, hidden_size=HIDDEN_SIZE):
    """Pure-JAX transcription of the PyTorch forward (dropout = identity).
    Works on un-batched (I,) rows and on batched (B, I) rows."""
    i, h = input_size, hidden_size

    def lin(wi, wh, b):
        return x @ wi.T + hidden_state @ wh.T + b

    fg = jax.nn.sigmoid(lin(params['fg_wi'], params['fg_wh'], params['fg_b']))
    ig = jax.nn.sigmoid(lin(params['in_wi'], params['in_wh'], params['in_b']))
    og = jax.nn.sigmoid(lin(params['out_wi'], params['out_wh'], params['out_b']))
    ci = jnp.tanh(lin(params['ci_wi'], params['ci_wh'], params['ci_b']))
    gi = lin(params['gi_wi'], params['gi_wh'], params['gi_b']).reshape(*x.shape[:-1], h, i)
    gh = lin(params['gh_wi'], params['gh_wh'], params['gh_b']).reshape(*x.shape[:-1], h, h)
    gb = lin(params['bg_wi'], params['bg_wh'], params['bg_b'])
    sm_out = jax.nn.sigmoid(jnp.einsum('...i,...hi->...h', x, gi)
                            + jnp.einsum('...k,...hk->...h', hidden_state, gh) + gb)
    new_c = fg * sm_out * cell_state + ig * ci
    out = og * jnp.tanh(new_c)
    return out, new_c, out


def smlstm_scan_reference(params, x_seq, cell_state0, hidden_state0,
                          input_size=INPUT_SIZE, hidden_size=HIDDEN_SIZE):
    c, hst = cell_state0, hidden_state0
    outs, cs = [], []
    for t in range(x_seq.shape[0]):
        out, c, _ = smlstm_reference(params, x_seq[t], c, hst,
                                     input_size=input_size, hidden_size=hidden_size)
        hst = out
        outs.append(out)
        cs.append(c)
    return jnp.stack(outs), jnp.stack(cs)


if __name__ == "__main__":
    I, H, B, T = INPUT_SIZE, HIDDEN_SIZE, 8, 8
    key = jax.random.PRNGKey(0)
    kx, kc, kh, kp, kxs, kcb, khb = jax.random.split(key, 7)

    x = jax.random.normal(kx, (I,), jnp.float32)
    c0 = jax.random.normal(kc, (H,), jnp.float32)
    h0 = jax.random.normal(kh, (H,), jnp.float32)

    fwd = jax.jit(smlstm_forward)
    scan = jax.jit(smlstm_scan)

    # (1) single-step parity with the exact PyTorch constant init
    params = make_params(I, H)
    w = pack_params(params)
    out, new_c, out2 = fwd(w, x, c0, h0)
    jax.block_until_ready((out, new_c, out2))
    r_out, r_new_c, _ = smlstm_reference(params, x, c0, h0)
    assert out.shape == (H,) and new_c.shape == (H,)
    assert jnp.allclose(out, r_out, atol=1e-5, rtol=1e-5)
    assert jnp.allclose(new_c, r_new_c, atol=1e-5, rtol=1e-5)

    # (2) single-step with random params (constant weights cannot distinguish
    #     the j*I+k flattening, so validate the reshape mapping with random ones)
    rparams = make_random_params(kp, I, H)
    rw = pack_params(rparams)
    out, new_c, _ = fwd(rw, x, c0, h0)
    jax.block_until_ready((out, new_c))
    r_out, r_new_c, _ = smlstm_reference(rparams, x, c0, h0)
    assert jnp.allclose(out, r_out, atol=1e-4, rtol=1e-4)
    assert jnp.allclose(new_c, r_new_c, atol=1e-4, rtol=1e-4)

    # (3) in-kernel scan over T steps with batch B: weight slab VMEM-resident,
    #     h/c carried in scratch -- the structural win from the perf review.
    x_seq = jax.random.normal(kxs, (T, B, I), jnp.float32)
    c0b = jax.random.normal(kcb, (B, H), jnp.float32)
    h0b = jax.random.normal(khb, (B, H), jnp.float32)
    out_seq, c_seq = scan(rw, x_seq, c0b, h0b)
    jax.block_until_ready((out_seq, c_seq))
    r_out_seq, r_c_seq = smlstm_scan_reference(rparams, x_seq, c0b, h0b)
    assert out_seq.shape == (T, B, H) and c_seq.shape == (T, B, H)
    assert jnp.allclose(out_seq, r_out_seq, atol=1e-3, rtol=1e-3)
    assert jnp.allclose(c_seq, r_c_seq, atol=1e-3, rtol=1e-3)

    # (4) bf16 weight slab (halves the dominant HBM read; f32 accumulation,
    #     elementwise math stays f32) -- looser tolerance per the review note.
    rw16 = pack_params(rparams, weight_dtype=jnp.bfloat16)
    out16, c16 = scan(rw16, x_seq, c0b, h0b)
    jax.block_until_ready((out16, c16))
    assert jnp.allclose(out16, r_out_seq, atol=5e-2, rtol=5e-2)
    assert jnp.allclose(c16, r_c_seq, atol=5e-2, rtol=5e-2)

    print("KERNEL_OK")
</pallas_src>

<mosaic_0001>
module attributes {stable_mosaic.version = 11 : i64} {
  func.func @smlstm_kernel(%arg0: i32, %arg1: memref<1x1x16xf32, #tpu.memory_space<vmem>>, %arg2: memref<1x32xf32, #tpu.memory_space<vmem>>, %arg3: memref<1x32xf32, #tpu.memory_space<vmem>>, %arg4: memref<49x1792xf32, #tpu.memory_space<vmem>>, %arg5: memref<1x1x64xf32, #tpu.memory_space<vmem>>, %arg6: memref<1x32xf32, #tpu.memory_space<vmem>>, %arg7: memref<1x32xf32, #tpu.memory_space<vmem>>) attributes {dimension_semantics = [#tpu.dimension_semantics<arbitrary>], iteration_bounds = array<i64: 1>, scalar_prefetch = 0 : i64, scratch_operands = 2 : i64, tpu.core_type = #tpu.core_type<tc>, window_params = [{transform_indices = @transform_0, window_bounds = array<i64: 1, 1, 16>}, {pipeline_mode = #tpu.pipeline_mode<synchronous>, transform_indices = @transform_1, window_bounds = array<i64: 1, 32>}, {pipeline_mode = #tpu.pipeline_mode<synchronous>, transform_indices = @transform_2, window_bounds = array<i64: 1, 32>}, {pipeline_mode = #tpu.pipeline_mode<synchronous>, transform_indices = @transform_3, window_bounds = array<i64: 49, 1792>}, {transform_indices = @transform_4, window_bounds = array<i64: 1, 1, 64>}]} {
    %c0_i32 = arith.constant 0 : i32
    %0 = arith.cmpi eq, %arg0, %c0_i32 : i32
    %1 = arith.extui %0 : i1 to i32
    %c0_i32_0 = arith.constant 0 : i32
    %2 = arith.cmpi ne, %1, %c0_i32_0 : i32
    scf.if %2 {
      %c0_21 = arith.constant 0 : index
      %c0_22 = arith.constant 0 : index
      %54 = vector.load %arg2[%c0_21, %c0_22] : memref<1x32xf32, #tpu.memory_space<vmem>>, vector<1x32xf32>
      %c0_23 = arith.constant 0 : index
      %c0_24 = arith.constant 0 : index
      %55 = vector.load %arg6[%c0_23, %c0_24] : memref<1x32xf32, #tpu.memory_space<vmem>>, vector<1x32xf32>
      tpu.vector_store %arg6[%c0_23, %c0_24], %54 {strides = array<i32>} : memref<1x32xf32, #tpu.memory_space<vmem>>, vector<1x32xf32>,
      %c0_25 = arith.constant 0 : index
      %c0_26 = arith.constant 0 : index
      %56 = vector.load %arg3[%c0_25, %c0_26] : memref<1x32xf32, #tpu.memory_space<vmem>>, vector<1x32xf32>
      %c0_27 = arith.constant 0 : index
      %c0_28 = arith.constant 0 : index
      %57 = vector.load %arg7[%c0_27, %c0_28] : memref<1x32xf32, #tpu.memory_space<vmem>>, vector<1x32xf32>
      tpu.vector_store %arg7[%c0_27, %c0_28], %56 {strides = array<i32>} : memref<1x32xf32, #tpu.memory_space<vmem>>, vector<1x32xf32>,
    } else {
    }
    %c0 = arith.constant 0 : index
    %c0_1 = arith.constant 0 : index
    %c0_2 = arith.constant 0 : index
    %3 = vector.load %arg1[%c0, %c0_1, %c0_2] : memref<1x1x16xf32, #tpu.memory_space<vmem>>, vector<1x1x16xf32>
    %4 = vector.shape_cast %3 : vector<1x1x16xf32> to vector<1x16xf32>
    %c0_3 = arith.constant 0 : index
    %c0_4 = arith.constant 0 : index
    %5 = vector.load %arg6[%c0_3, %c0_4] : memref<1x32xf32, #tpu.memory_space<vmem>>, vector<1x32xf32>
    %c0_5 = arith.constant 0 : index
    %c0_6 = arith.constant 0 : index
    %6 = vector.load %arg7[%c0_5, %c0_6] : memref<1x32xf32, #tpu.memory_space<vmem>>, vector<1x32xf32>
    %cst = arith.constant 1.000000e+00 : f32
    %7 = vector.broadcast %cst : f32 to vector<1x1xf32>
    %8 = tpu.concatenate %4, %5, %7 in 1 : vector<1x16xf32>, vector<1x32xf32>, vector<1x1xf32> -> vector<1x49xf32>
    %c0_7 = arith.constant 0 : index
    %c0_8 = arith.constant 0 : index
    %9 = vector.load %arg4[%c0_7, %c0_8] : memref<49x1792xf32, #tpu.memory_space<vmem>>, vector<49x1792xf32>
    %cst_9 = arith.constant dense<0.000000e+00> : vector<1x1792xf32>
    %10 = tpu.matmul %8, %9, %cst_9 {dimension_numbers = #tpu.dot_dimension_numbers<[1], [0], [0], [1], [0, 0, 1, 1], [], []>} : vector<1x49xf32>, vector<49x1792xf32>, vector<1x1792xf32> -> vector<1x1792xf32>
    %11 = vector.extract_strided_slice %10 {offsets = [0, 0], sizes = [1, 96], strides = [1, 1]} : vector<1x1792xf32> to vector<1x96xf32>
    %12 = arith.negf %11 : vector<1x96xf32>
    %13 = math.exp %12 : vector<1x96xf32>
    %cst_10 = arith.constant 1.000000e+00 : f32
    %14 = vector.broadcast %cst_10 : f32 to vector<1x96xf32>
    %15 = arith.addf %14, %13 : vector<1x96xf32>
    %16 = arith.divf %14, %15 : vector<1x96xf32>
    %17 = vector.extract_strided_slice %16 {offsets = [0, 0], sizes = [1, 32], strides = [1, 1]} : vector<1x96xf32> to vector<1x32xf32>
    %18 = vector.extract_strided_slice %16 {offsets = [0, 32], sizes = [1, 32], strides = [1, 1]} : vector<1x96xf32> to vector<1x32xf32>
    %19 = vector.extract_strided_slice %16 {offsets = [0, 64], sizes = [1, 32], strides = [1, 1]} : vector<1x96xf32> to vector<1x32xf32>
    %20 = vector.extract_strided_slice %10 {offsets = [0, 96], sizes = [1, 32], strides = [1, 1]} : vector<1x1792xf32> to vector<1x32xf32>
    %21 = math.tanh %20 : vector<1x32xf32>
    %22 = vector.extract_strided_slice %10 {offsets = [0, 1664], sizes = [1, 32], strides = [1, 1]} : vector<1x1792xf32> to vector<1x32xf32>
    %23 = vector.extract_strided_slice %10 {offsets = [0, 128], sizes = [1, 512], strides = [1, 1]} : vector<1x1792xf32> to vector<1x512xf32>
    %24 = vector.shape_cast %23 : vector<1x512xf32> to vector<1x32x16xf32>
    %25 = vector.extract_strided_slice %10 {offsets = [0, 640], sizes = [1, 1024], strides = [1, 1]} : vector<1x1792xf32> to vector<1x1024xf32>
    %26 = vector.shape_cast %25 : vector<1x1024xf32> to vector<1x32x32xf32>
    %27 = vector.shape_cast %4 : vector<1x16xf32> to vector<1x1x16xf32>
    %28 = vector.broadcast %27 : vector<1x1x16xf32> to vector<1x32x16xf32>
    %29 = arith.mulf %24, %28 : vector<1x32x16xf32>
    %cst_11 = arith.constant dense<0.000000e+00> : vector<1x32xf32>
    %30 = vector.multi_reduction <add>, %29, %cst_11 [2] : vector<1x32x16xf32> to vector<1x32xf32>
    %31 = vector.shape_cast %5 : vector<1x32xf32> to vector<1x1x32xf32>
    %32 = vector.broadcast %31 : vector<1x1x32xf32> to vector<1x32x32xf32>
    %33 = arith.mulf %26, %32 : vector<1x32x32xf32>
    %cst_12 = arith.constant dense<0.000000e+00> : vector<1x32xf32>
    %34 = vector.multi_reduction <add>, %33, %cst_12 [2] : vector<1x32x32xf32> to vector<1x32xf32>
    %35 = arith.addf %30, %34 : vector<1x32xf32>
    %36 = arith.addf %35, %22 : vector<1x32xf32>
    %37 = arith.negf %36 : vector<1x32xf32>
    %38 = math.exp %37 : vector<1x32xf32>
    %cst_13 = arith.constant 1.000000e+00 : f32
    %39 = vector.broadcast %cst_13 : f32 to vector<1x32xf32>
    %40 = arith.addf %39, %38 : vector<1x32xf32>
    %41 = arith.divf %39, %40 : vector<1x32xf32>
    %42 = arith.mulf %17, %41 : vector<1x32xf32>
    %43 = arith.mulf %42, %6 : vector<1x32xf32>
    %44 = arith.mulf %18, %21 : vector<1x32xf32>
    %45 = arith.addf %43, %44 : vector<1x32xf32>
    %46 = math.tanh %45 : vector<1x32xf32>
    %47 = arith.mulf %19, %46 : vector<1x32xf32>
    %c0_14 = arith.constant 0 : index
    %c0_15 = arith.constant 0 : index
    %48 = vector.load %arg6[%c0_14, %c0_15] : memref<1x32xf32, #tpu.memory_space<vmem>>, vector<1x32xf32>
    tpu.vector_store %arg6[%c0_14, %c0_15], %47 {strides = array<i32>} : memref<1x32xf32, #tpu.memory_space<vmem>>, vector<1x32xf32>,
    %c0_16 = arith.constant 0 : index
    %c0_17 = arith.constant 0 : index
    %49 = vector.load %arg7[%c0_16, %c0_17] : memref<1x32xf32, #tpu.memory_space<vmem>>, vector<1x32xf32>
    tpu.vector_store %arg7[%c0_16, %c0_17], %45 {strides = array<i32>} : memref<1x32xf32, #tpu.memory_space<vmem>>, vector<1x32xf32>,
    %50 = tpu.concatenate %47, %45 in 1 : vector<1x32xf32>, vector<1x32xf32> -> vector<1x64xf32>
    %c0_18 = arith.constant 0 : index
    %c0_19 = arith.constant 0 : index
    %c0_20 = arith.constant 0 : index
    %51 = vector.load %arg5[%c0_18, %c0_19, %c0_20] : memref<1x1x64xf32, #tpu.memory_space<vmem>>, vector<1x1x64xf32>
    %52 = vector.shape_cast %51 : vector<1x1x64xf32> to vector<1x64xf32>
    %53 = vector.shape_cast %50 : vector<1x64xf32> to vector<1x1x64xf32>
    tpu.vector_store %arg5[%c0_18, %c0_19, %c0_20], %53 {strides = array<i32>} : memref<1x1x64xf32, #tpu.memory_space<vmem>>, vector<1x1x64xf32>,
    return
  }
  func.func @transform_0(%arg0: i32) -> (i32, i32, i32) {
    %c0_i32 = arith.constant 0 : i32
    %c0_i32_0 = arith.constant 0 : i32
    %c0_i32_1 = arith.constant 0 : i32
    return %arg0, %c0_i32, %c0_i32_0 : i32, i32, i32
  }
  func.func @transform_1(%arg0: i32) -> (i32, i32) {
    %c0_i32 = arith.constant 0 : i32
    %c0_i32_0 = arith.constant 0 : i32
    %c0_i32_1 = arith.constant 0 : i32
    return %c0_i32, %c0_i32_0 : i32, i32
  }
  func.func @transform_2(%arg0: i32) -> (i32, i32) {
    %c0_i32 = arith.constant 0 : i32
    %c0_i32_0 = arith.constant 0 : i32
    %c0_i32_1 = arith.constant 0 : i32
    return %c0_i32, %c0_i32_0 : i32, i32
  }
  func.func @transform_3(%arg0: i32) -> (i32, i32) {
    %c0_i32 = arith.constant 0 : i32
    %c0_i32_0 = arith.constant 0 : i32
    %c0_i32_1 = arith.constant 0 : i32
    return %c0_i32, %c0_i32_0 : i32, i32
  }
  func.func @transform_4(%arg0: i32) -> (i32, i32, i32) {
    %c0_i32 = arith.constant 0 : i32
    %c0_i32_0 = arith.constant 0 : i32
    %c0_i32_1 = arith.constant 0 : i32
    return %arg0, %c0_i32, %c0_i32_0 : i32, i32, i32
  }
}

</mosaic_0001>

<llo_original>
// kernel: smlstm_forward.1
$region0: #{smlstm_forward.1}
  #allocation0 [shape = 'u32[]', space=smem, size = 0x4, offset = 0x4, fixed_abs, tag = 'smem constant byte address 0x4 - core index']
  #allocation1 [shape = 'u32[72,128]{1,0:T(1,128)}', space=vmem, size = 0x9000, scoped, tag = 'internal scratch']
  #allocation2 [shape = 'f32[1,32]{1,0:T(1,128)}', space=vmem, size = 0x200, scoped, tag = 'scratch operand']
  #allocation3 [shape = 'f32[1,32]{1,0:T(1,128)}', space=vmem, size = 0x200, scoped, tag = 'scratch operand']
  %s0 = inlined_call_operand.vmem [shape: f32[1,1,16], index: 0, kind: input, shape index: {}]
  %s1 = inlined_call_operand.vmem [shape: f32[1,32], index: 1, kind: input, shape index: {}]
  %s2 = inlined_call_operand.vmem [shape: f32[1,32], index: 2, kind: input, shape index: {}]
  %s3 = inlined_call_operand.hbm [shape: f32[49,1792], index: 3, kind: input, shape index: {}]
  %s4 = inlined_call_operand.vmem [shape: f32[1,1,64], index: 4, kind: output, shape index: {}]
  %s5 = sld [smem:[#allocation0]]
  $region34: #{smlstm_forward.1} parent=0
    _
  %s7 = ssub.s32 1, %s5
  %s8 = scalar_select 0, %s7, %s5
  $region1: #{smlstm_forward.1} parent=0
    #allocation4 [shape = 'u8[401408]{0}', space=vmem, size = 0x62000, scoped, tag = 'input window, operand 3, single buffered']
    #allocation5 [shape = 's32[1]{0}', space=sflag, size = 0x4, scoped, tag = 'scoped memory for smlstm_forward.1']
    %9 = vsyncpa [#allocation5], 0
    // Predicated region
    $region2: #{smlstm_forward.1} parent=1 // pred_check
      _
    $region3: #{smlstm_forward.1} parent=1 // pred_check_branch
      %11 = sbr.rel (0) target = $region5
    $region4: #{smlstm_forward.1} parent=1 // pred_region
      _
    $region5: #{smlstm_forward.1} parent=1 // pred_fallthru
      _
    // Predicated region
    $region6: #{smlstm_forward.1} parent=1 // pred_check
      _
    $region7: #{smlstm_forward.1} parent=1 // pred_check_branch
      %13 = sbr.rel (0) target = $region9
    $region8: #{smlstm_forward.1} parent=1 // pred_region
      _
    $region9: #{smlstm_forward.1} parent=1 // pred_fallthru
      _
    // Predicated region
    $region10: #{smlstm_forward.1} parent=1 // pred_check
      _
    $region11: #{smlstm_forward.1} parent=1 // pred_check_branch
      %15 = sbr.rel (0) target = $region13
    $region12: #{smlstm_forward.1} parent=1 // pred_region
      _
    $region13: #{smlstm_forward.1} parent=1 // pred_fallthru
      _
    // Predicated region
    $region14: #{smlstm_forward.1} parent=1 // pred_check
      _
    $region15: #{smlstm_forward.1} parent=1 // pred_check_branch
      %17 = sbr.rel (0) target = $region17
    $region16: #{smlstm_forward.1} parent=1 // pred_region
      %19 = vsyncadd [#allocation5], 0
      %s20 = sshll.u32 %s3, 4
      %s21 = int_to_ptr.hbm [resolvable:$true] %s20
      %s22 = sshll.u32 [#allocation4], 4
      %s23 = int_to_ptr.vmem [resolvable:$true] %s22
      %28 = dma.hbm_to_vmem [thread:$0]  %s21, 12544, %s23, [#allocation5], 1792, 1792, 112
    $region17: #{smlstm_forward.1} parent=1 // pred_fallthru
      _
    // Predicated region
    $region18: #{smlstm_forward.1} parent=1 // pred_check
      _
    $region19: #{smlstm_forward.1} parent=1 // pred_check_branch
      %30 = sbr.rel (0) target = $region21
    $region20: #{smlstm_forward.1} parent=1 // pred_region
      %32 = dma.done [#allocation5], 12544
    $region21: #{smlstm_forward.1} parent=1 // pred_fallthru
      _
    %p33 = scmp.eq.s32.totalorder 0, 0
    // Predicated region
    $region22: #{smlstm_forward.1} parent=1 // pred_check
      %p34 = pneg %p33
    $region23: #{smlstm_forward.1} parent=1 // pred_check_branch
      %36 = sbr.rel (%p34) target = $region25
    $region24: #{smlstm_forward.1} parent=1 // pred_region
      %v37 = vld [vmem:[%s1] sm:$0x1]
      %vm38 = vcmask 253952
      %39 = vst.msk [vmem:[#allocation2] sm:$0x1] %vm38, %v37
      %v40 = vld [vmem:[%s2] sm:$0x1]
      %41 = vst.msk [vmem:[#allocation3] sm:$0x1] %vm38, %v40
    $region25: #{smlstm_forward.1} parent=1 // pred_fallthru
      _
    %v42 = vld [vmem:[%s0] sm:$0x1]
    %v43 = vld [vmem:[#allocation2] sm:$0x1]
    %v44 = vld [vmem:[#allocation3] sm:$0x1]
    %v46 = vperm.slane %v43, 0
    %47 = vrot.lane.b32.xlu0 %v46, 16
    %v48 = vpop.permute.xlu0 %47
    %vm50 = vcmask 130048
    %v51 = vsel %vm50, %v42, %v48
    %vm52 = vcmask 392192
    %v53 = vsel %vm52, %v51, 1.0
    %v54 = vld [vmem:[#allocation4] sm:$0xff]
    %v55 = vld [vmem:[#allocation4 + $0x8] sm:$0xff]
    %v56 = vld [vmem:[#allocation4 + $0x10] sm:$0xff]
    %v57 = vld [vmem:[#allocation4 + $0x18] sm:$0xff]
    %v58 = vld [vmem:[#allocation4 + $0x20] sm:$0xff]
    %v59 = vld [vmem:[#allocation4 + $0x28] sm:$0xff]
    %v60 = vld [vmem:[#allocation4 + $0x30] sm:$0xff]
    %v61 = vld [vmem:[#allocation4 + $0x38] sm:$0xff]
    %v62 = vld [vmem:[#allocation4 + $0x40] sm:$0xff]
    %v63 = vld [vmem:[#allocation4 + $0x48] sm:$0xff]
    %v64 = vld [vmem:[#allocation4 + $0x50] sm:$0xff]
    %v65 = vld [vmem:[#allocation4 + $0x58] sm:$0xff]
    %v66 = vld [vmem:[#allocation4 + $0x60] sm:$0xff]
    %v67 = vld [vmem:[#allocation4 + $0x68] sm:$0xff]
    %v68 = vld [vmem:[#allocation4 + $0x70] sm:$0xff]
    %v69 = vld [vmem:[#allocation4 + $0x78] sm:$0xff]
    %v70 = vld [vmem:[#allocation4 + $0x80] sm:$0xff]
    %v71 = vld [vmem:[#allocation4 + $0x88] sm:$0xff]
    %v72 = vld [vmem:[#allocation4 + $0x90] sm:$0xff]
    %v73 = vld [vmem:[#allocation4 + $0x98] sm:$0xff]
    %v74 = vld [vmem:[#allocation4 + $0xa0] sm:$0xff]
    %v75 = vld [vmem:[#allocation4 + $0xa8] sm:$0xff]
    %v76 = vld [vmem:[#allocation4 + $0xb0] sm:$0xff]
    %v77 = vld [vmem:[#allocation4 + $0xb8] sm:$0xff]
    %v78 = vld [vmem:[#allocation4 + $0xc0] sm:$0xff]
    %v79 = vld [vmem:[#allocation4 + $0xc8] sm:$0xff]
    %v80 = vld [vmem:[#allocation4 + $0xd0] sm:$0xff]
    %v81 = vld [vmem:[#allocation4 + $0xd8] sm:$0xff]
    %v82 = vld [vmem:[#allocation4 + $0xe0] sm:$0xff]
    %v83 = vld [vmem:[#allocation4 + $0xe8] sm:$0xff]
    %v84 = vld [vmem:[#allocation4 + $0xf0] sm:$0xff]
    %v85 = vld [vmem:[#allocation4 + $0xf8] sm:$0xff]
    %v86 = vld [vmem:[#allocation4 + $0x100] sm:$0xff]
    %v87 = vld [vmem:[#allocation4 + $0x108] sm:$0xff]
    %v88 = vld [vmem:[#allocation4 + $0x110] sm:$0xff]
    %v89 = vld [vmem:[#allocation4 + $0x118] sm:$0xff]
    %v90 = vld [vmem:[#allocation4 + $0x120] sm:$0xff]
    %v91 = vld [vmem:[#allocation4 + $0x128] sm:$0xff]
    %v92 = vld [vmem:[#allocation4 + $0x130] sm:$0xff]
    %v93 = vld [vmem:[#allocation4 + $0x138] sm:$0xff]
    %v94 = vld [vmem:[#allocation4 + $0x140] sm:$0xff]
    %v95 = vld [vmem:[#allocation4 + $0x148] sm:$0xff]
    %v96 = vld [vmem:[#allocation4 + $0x150] sm:$0xff]
    %v97 = vld [vmem:[#allocation4 + $0x158] sm:$0xff]
    %v98 = vld [vmem:[#allocation4 + $0x160] sm:$0xff]
    %v99 = vld [vmem:[#allocation4 + $0x168] sm:$0xff]
    %v100 = vld [vmem:[#allocation4 + $0x170] sm:$0xff]
    %v101 = vld [vmem:[#allocation4 + $0x178] sm:$0xff]
    %v102 = vld [vmem:[#allocation4 + $0x180] sm:$0xff]
    %v103 = vld [vmem:[#allocation4 + $0x188] sm:$0xff]
    %v104 = vld [vmem:[#allocation4 + $0x190] sm:$0xff]
    %v105 = vld [vmem:[#allocation4 + $0x198] sm:$0xff]
    %v106 = vld [vmem:[#allocation4 + $0x1a0] sm:$0xff]
    %v107 = vld [vmem:[#allocation4 + $0x1a8] sm:$0xff]
    %v108 = vld [vmem:[#allocation4 + $0x1b0] sm:$0xff]
    %v109 = vld [vmem:[#allocation4 + $0x1b8] sm:$0xff]
    %v110 = vld [vmem:[#allocation4 + $0x1c0] sm:$0xff]
    %v111 = vld [vmem:[#allocation4 + $0x1c8] sm:$0xff]
    %v112 = vld [vmem:[#allocation4 + $0x1d0] sm:$0xff]
    %v113 = vld [vmem:[#allocation4 + $0x1d8] sm:$0xff]
    %v114 = vld [vmem:[#allocation4 + $0x1e0] sm:$0xff]
    %v115 = vld [vmem:[#allocation4 + $0x1e8] sm:$0xff]
    %v116 = vld [vmem:[#allocation4 + $0x1f0] sm:$0xff]
    %v117 = vld [vmem:[#allocation4 + $0x1f8] sm:$0xff]
    %v118 = vld [vmem:[#allocation4 + $0x200] sm:$0xff]
    %v119 = vld [vmem:[#allocation4 + $0x208] sm:$0xff]
    %v120 = vld [vmem:[#allocation4 + $0x210] sm:$0xff]
    %v121 = vld [vmem:[#allocation4 + $0x218] sm:$0xff]
    %v122 = vld [vmem:[#allocation4 + $0x220] sm:$0xff]
    %v123 = vld [vmem:[#allocation4 + $0x228] sm:$0xff]
    %v124 = vld [vmem:[#allocation4 + $0x230] sm:$0xff]
    %v125 = vld [vmem:[#allocation4 + $0x238] sm:$0xff]
    %v126 = vld [vmem:[#allocation4 + $0x240] sm:$0xff]
    %v127 = vld [vmem:[#allocation4 + $0x248] sm:$0xff]
    %v128 = vld [vmem:[#allocation4 + $0x250] sm:$0xff]
    %v129 = vld [vmem:[#allocation4 + $0x258] sm:$0xff]
    %v130 = vld [vmem:[#allocation4 + $0x260] sm:$0xff]
    %v131 = vld [vmem:[#allocation4 + $0x268] sm:$0xff]
    %v132 = vld [vmem:[#allocation4 + $0x270] sm:$0xff]
    %v133 = vld [vmem:[#allocation4 + $0x278] sm:$0xff]
    %v134 = vld [vmem:[#allocation4 + $0x280] sm:$0xff]
    %v135 = vld [vmem:[#allocation4 + $0x288] sm:$0xff]
    %v136 = vld [vmem:[#allocation4 + $0x290] sm:$0xff]
    %v137 = vld [vmem:[#allocation4 + $0x298] sm:$0xff]
    %v138 = vld [vmem:[#allocation4 + $0x2a0] sm:$0x1]
    %v139 = vld [vmem:[#allocation4 + $0x2a8] sm:$0x1]
    %v140 = vld [vmem:[#allocation4 + $0x2b0] sm:$0x1]
    %v141 = vld [vmem:[#allocation4 + $0x2b8] sm:$0x1]
    %v142 = vld [vmem:[#allocation4 + $0x2c0] sm:$0x1]
    %v143 = vld [vmem:[#allocation4 + $0x2c8] sm:$0x1]
    %v144 = vld [vmem:[#allocation4 + $0x2d0] sm:$0x1]
    %v145 = vld [vmem:[#allocation4 + $0x2d8] sm:$0x1]
    %v146 = vld [vmem:[#allocation4 + $0x2e0] sm:$0x1]
    %v147 = vld [vmem:[#allocation4 + $0x2e8] sm:$0x1]
    %v148 = vld [vmem:[#allocation4 + $0x2f0] sm:$0x1]
    %v149 = vld [vmem:[#allocation4 + $0x2f8] sm:$0x1]
    %v150 = vld [vmem:[#allocation4 + $0x300] sm:$0x1]
    %v151 = vld [vmem:[#allocation4 + $0x308] sm:$0x1]
    %vm152 = vcmask 400384
    %v154 = vsel %vm152, %v53, 0
    %vm156 = vcmask 1040384
    %v158 = vsel %vm156, %v138, 0
    %v161 = vsel %vm156, %v139, 0
    %v164 = vsel %vm156, %v140, 0
    %v167 = vsel %vm156, %v141, 0
    %v170 = vsel %vm156, %v142, 0
    %v173 = vsel %vm156, %v143, 0
    %v176 = vsel %vm156, %v144, 0
    %v179 = vsel %vm156, %v145, 0
    %v182 = vsel %vm156, %v146, 0
    %v185 = vsel %vm156, %v147, 0
    %v188 = vsel %vm156, %v148, 0
    %v191 = vsel %vm156, %v149, 0
    %v194 = vsel %vm156, %v150, 0
    %v197 = vsel %vm156, %v151, 0
    %199 = vmatpush.msra.mxu0 0.0
    %200 = vmatpush.msra.mxu0 0.0
    %201 = vmatpush.msra.mxu0 0.0
    %202 = vmatpush.msra.mxu0 0.0
    %203 = vmatpush.msra.mxu0 0.0
    %204 = vmatpush.msra.mxu0 0.0
    %205 = vmatpush.msra.mxu0 0.0
    %206 = vmatpush.msra.mxu0 0.0
    %207 = vmatpush.msra.mxu0 0.0
    %208 = vmatpush.msra.mxu0 %v158
    %209 = vmatpush.msra.mxu0 %v124
    %210 = vmatpush.msra.mxu0 %v110
    %211 = vmatpush.msra.mxu0 %v96
    %212 = vmatpush.msra.mxu0 %v82
    %213 = vmatpush.msra.mxu0 %v68
    %214 = vmatpush.msra.mxu0 %v54
    %215 = vmatmul.f32.gmra.mxu0 %v154
    %v216 = vpop.f32.mrf.mxu0
    %v217 = vadd.f32 0.0, %v216
    %218 = vdwg.mxu0
    %219 = vmatpush.msra.mxu0 0.0
    %220 = vmatpush.msra.mxu0 0.0
    %221 = vmatpush.msra.mxu0 0.0
    %222 = vmatpush.msra.mxu0 0.0
    %223 = vmatpush.msra.mxu0 0.0
    %224 = vmatpush.msra.mxu0 0.0
    %225 = vmatpush.msra.mxu0 0.0
    %226 = vmatpush.msra.mxu0 0.0
    %227 = vmatpush.msra.mxu0 0.0
    %228 = vmatpush.msra.mxu0 %v161
    %229 = vmatpush.msra.mxu0 %v125
    %230 = vmatpush.msra.mxu0 %v111
    %231 = vmatpush.msra.mxu0 %v97
    %232 = vmatpush.msra.mxu0 %v83
    %233 = vmatpush.msra.mxu0 %v69
    %234 = vmatpush.msra.mxu0 %v55
    %235 = vmatmul.f32.gmra.mxu0 %v154
    %v236 = vpop.f32.mrf.mxu0
    %v237 = vadd.f32 0.0, %v236
    %238 = vdwg.mxu0
    %239 = vmatpush.msra.mxu0 0.0
    %240 = vmatpush.msra.mxu0 0.0
    %241 = vmatpush.msra.mxu0 0.0
    %242 = vmatpush.msra.mxu0 0.0
    %243 = vmatpush.msra.mxu0 0.0
    %244 = vmatpush.msra.mxu0 0.0
    %245 = vmatpush.msra.mxu0 0.0
    %246 = vmatpush.msra.mxu0 0.0
    %247 = vmatpush.msra.mxu0 0.0
    %248 = vmatpush.msra.mxu0 %v164
    %249 = vmatpush.msra.mxu0 %v126
    %250 = vmatpush.msra.mxu0 %v112
    %251 = vmatpush.msra.mxu0 %v98
    %252 = vmatpush.msra.mxu0 %v84
    %253 = vmatpush.msra.mxu0 %v70
    %254 = vmatpush.msra.mxu0 %v56
    %255 = vmatmul.f32.gmra.mxu0 %v154
    %v256 = vpop.f32.mrf.mxu0
    %v257 = vadd.f32 0.0, %v256
    %258 = vdwg.mxu0
    %259 = vmatpush.msra.mxu0 0.0
    %260 = vmatpush.msra.mxu0 0.0
    %261 = vmatpush.msra.mxu0 0.0
    %262 = vmatpush.msra.mxu0 0.0
    %263 = vmatpush.msra.mxu0 0.0
    %264 = vmatpush.msra.mxu0 0.0
    %265 = vmatpush.msra.mxu0 0.0
    %266 = vmatpush.msra.mxu0 0.0
    %267 = vmatpush.msra.mxu0 0.0
    %268 = vmatpush.msra.mxu0 %v167
    %269 = vmatpush.msra.mxu0 %v127
    %270 = vmatpush.msra.mxu0 %v113
    %271 = vmatpush.msra.mxu0 %v99
    %272 = vmatpush.msra.mxu0 %v85
    %273 = vmatpush.msra.mxu0 %v71
    %274 = vmatpush.msra.mxu0 %v57
    %275 = vmatmul.f32.gmra.mxu0 %v154
    %v276 = vpop.f32.mrf.mxu0
    %v277 = vadd.f32 0.0, %v276
    %278 = vdwg.mxu0
    %279 = vmatpush.msra.mxu0 0.0
    %280 = vmatpush.msra.mxu0 0.0
    %281 = vmatpush.msra.mxu0 0.0
    %282 = vmatpush.msra.mxu0 0.0
    %283 = vmatpush.msra.mxu0 0.0
    %284 = vmatpush.msra.mxu0 0.0
    %285 = vmatpush.msra.mxu0 0.0
    %286 = vmatpush.msra.mxu0 0.0
    %287 = vmatpush.msra.mxu0 0.0
    %288 = vmatpush.msra.mxu0 %v170
    %289 = vmatpush.msra.mxu0 %v128
    %290 = vmatpush.msra.mxu0 %v114
    %291 = vmatpush.msra.mxu0 %v100
    %292 = vmatpush.msra.mxu0 %v86
    %293 = vmatpush.msra.mxu0 %v72
    %294 = vmatpush.msra.mxu0 %v58
    %295 = vmatmul.f32.gmra.mxu0 %v154
    %v296 = vpop.f32.mrf.mxu0
    %v297 = vadd.f32 0.0, %v296
    %298 = vdwg.mxu0
    %299 = vmatpush.msra.mxu0 0.0
    %300 = vmatpush.msra.mxu0 0.0
    %301 = vmatpush.msra.mxu0 0.0
    %302 = vmatpush.msra.mxu0 0.0
    %303 = vmatpush.msra.mxu0 0.0
    %304 = vmatpush.msra.mxu0 0.0
    %305 = vmatpush.msra.mxu0 0.0
    %306 = vmatpush.msra.mxu0 0.0
    %307 = vmatpush.msra.mxu0 0.0
    %308 = vmatpush.msra.mxu0 %v173
    %309 = vmatpush.msra.mxu0 %v129
    %310 = vmatpush.msra.mxu0 %v115
    %311 = vmatpush.msra.mxu0 %v101
    %312 = vmatpush.msra.mxu0 %v87
    %313 = vmatpush.msra.mxu0 %v73
    %314 = vmatpush.msra.mxu0 %v59
    %315 = vmatmul.f32.gmra.mxu0 %v154
    %v316 = vpop.f32.mrf.mxu0
    %v317 = vadd.f32 0.0, %v316
    %318 = vdwg.mxu0
    %319 = vmatpush.msra.mxu0 0.0
    %320 = vmatpush.msra.mxu0 0.0
    %321 = vmatpush.msra.mxu0 0.0
    %322 = vmatpush.msra.mxu0 0.0
    %323 = vmatpush.msra.mxu0 0.0
    %324 = vmatpush.msra.mxu0 0.0
    %325 = vmatpush.msra.mxu0 0.0
    %326 = vmatpush.msra.mxu0 0.0
    %327 = vmatpush.msra.mxu0 0.0
    %328 = vmatpush.msra.mxu0 %v176
    %329 = vmatpush.msra.mxu0 %v130
    %330 = vmatpush.msra.mxu0 %v116
    %331 = vmatpush.msra.mxu0 %v102
    %332 = vmatpush.msra.mxu0 %v88
    %333 = vmatpush.msra.mxu0 %v74
    %334 = vmatpush.msra.mxu0 %v60
    %335 = vmatmul.f32.gmra.mxu0 %v154
    %v336 = vpop.f32.mrf.mxu0
    %v337 = vadd.f32 0.0, %v336
    %338 = vdwg.mxu0
    %339 = vmatpush.msra.mxu0 0.0
    %340 = vmatpush.msra.mxu0 0.0
    %341 = vmatpush.msra.mxu0 0.0
    %342 = vmatpush.msra.mxu0 0.0
    %343 = vmatpush.msra.mxu0 0.0
    %344 = vmatpush.msra.mxu0 0.0
    %345 = vmatpush.msra.mxu0 0.0
    %346 = vmatpush.msra.mxu0 0.0
    %347 = vmatpush.msra.mxu0 0.0
    %348 = vmatpush.msra.mxu0 %v179
    %349 = vmatpush.msra.mxu0 %v131
    %350 = vmatpush.msra.mxu0 %v117
    %351 = vmatpush.msra.mxu0 %v103
    %352 = vmatpush.msra.mxu0 %v89
    %353 = vmatpush.msra.mxu0 %v75
    %354 = vmatpush.msra.mxu0 %v61
    %355 = vmatmul.f32.gmra.mxu0 %v154
    %v356 = vpop.f32.mrf.mxu0
    %v357 = vadd.f32 0.0, %v356
    %358 = vdwg.mxu0
    %359 = vmatpush.msra.mxu0 0.0
    %360 = vmatpush.msra.mxu0 0.0
    %361 = vmatpush.msra.mxu0 0.0
    %362 = vmatpush.msra.mxu0 0.0
    %363 = vmatpush.msra.mxu0 0.0
    %364 = vmatpush.msra.mxu0 0.0
    %365 = vmatpush.msra.mxu0 0.0
    %366 = vmatpush.msra.mxu0 0.0
    %367 = vmatpush.msra.mxu0 0.0
    %368 = vmatpush.msra.mxu0 %v182
    %369 = vmatpush.msra.mxu0 %v132
    %370 = vmatpush.msra.mxu0 %v118
    %371 = vmatpush.msra.mxu0 %v104
    %372 = vmatpush.msra.mxu0 %v90
    %373 = vmatpush.msra.mxu0 %v76
    %374 = vmatpush.msra.mxu0 %v62
    %375 = vmatmul.f32.gmra.mxu0 %v154
    %v376 = vpop.f32.mrf.mxu0
    %v377 = vadd.f32 0.0, %v376
    %378 = vdwg.mxu0
    %379 = vmatpush.msra.mxu0 0.0
    %380 = vmatpush.msra.mxu0 0.0
    %381 = vmatpush.msra.mxu0 0.0
    %382 = vmatpush.msra.mxu0 0.0
    %383 = vmatpush.msra.mxu0 0.0
    %384 = vmatpush.msra.mxu0 0.0
    %385 = vmatpush.msra.mxu0 0.0
    %386 = vmatpush.msra.mxu0 0.0
    %387 = vmatpush.msra.mxu0 0.0
    %388 = vmatpush.msra.mxu0 %v185
    %389 = vmatpush.msra.mxu0 %v133
    %390 = vmatpush.msra.mxu0 %v119
    %391 = vmatpush.msra.mxu0 %v105
    %392 = vmatpush.msra.mxu0 %v91
    %393 = vmatpush.msra.mxu0 %v77
    %394 = vmatpush.msra.mxu0 %v63
    %395 = vmatmul.f32.gmra.mxu0 %v154
    %v396 = vpop.f32.mrf.mxu0
    %v397 = vadd.f32 0.0, %v396
    %398 = vdwg.mxu0
    %399 = vmatpush.msra.mxu0 0.0
    %400 = vmatpush.msra.mxu0 0.0
    %401 = vmatpush.msra.mxu0 0.0
    %402 = vmatpush.msra.mxu0 0.0
    %403 = vmatpush.msra.mxu0 0.0
    %404 = vmatpush.msra.mxu0 0.0
    %405 = vmatpush.msra.mxu0 0.0
    %406 = vmatpush.msra.mxu0 0.0
    %407 = vmatpush.msra.mxu0 0.0
    %408 = vmatpush.msra.mxu0 %v188
    %409 = vmatpush.msra.mxu0 %v134
    %410 = vmatpush.msra.mxu0 %v120
    %411 = vmatpush.msra.mxu0 %v106
    %412 = vmatpush.msra.mxu0 %v92
    %413 = vmatpush.msra.mxu0 %v78
    %414 = vmatpush.msra.mxu0 %v64
    %415 = vmatmul.f32.gmra.mxu0 %v154
    %v416 = vpop.f32.mrf.mxu0
    %v417 = vadd.f32 0.0, %v416
    %418 = vdwg.mxu0
    %419 = vmatpush.msra.mxu0 0.0
    %420 = vmatpush.msra.mxu0 0.0
    %421 = vmatpush.msra.mxu0 0.0
    %422 = vmatpush.msra.mxu0 0.0
    %423 = vmatpush.msra.mxu0 0.0
    %424 = vmatpush.msra.mxu0 0.0
    %425 = vmatpush.msra.mxu0 0.0
    %426 = vmatpush.msra.mxu0 0.0
    %427 = vmatpush.msra.mxu0 0.0
    %428 = vmatpush.msra.mxu0 %v191
    %429 = vmatpush.msra.mxu0 %v135
    %430 = vmatpush.msra.mxu0 %v121
    %431 = vmatpush.msra.mxu0 %v107
    %432 = vmatpush.msra.mxu0 %v93
    %433 = vmatpush.msra.mxu0 %v79
    %434 = vmatpush.msra.mxu0 %v65
    %435 = vmatmul.f32.gmra.mxu0 %v154
    %v436 = vpop.f32.mrf.mxu0
    %v437 = vadd.f32 0.0, %v436
    %438 = vdwg.mxu0
    %439 = vmatpush.msra.mxu0 0.0
    %440 = vmatpush.msra.mxu0 0.0
    %441 = vmatpush.msra.mxu0 0.0
    %442 = vmatpush.msra.mxu0 0.0
    %443 = vmatpush.msra.mxu0 0.0
    %444 = vmatpush.msra.mxu0 0.0
    %445 = vmatpush.msra.mxu0 0.0
    %446 = vmatpush.msra.mxu0 0.0
    %447 = vmatpush.msra.mxu0 0.0
    %448 = vmatpush.msra.mxu0 %v194
    %449 = vmatpush.msra.mxu0 %v136
    %450 = vmatpush.msra.mxu0 %v122
    %451 = vmatpush.msra.mxu0 %v108
    %452 = vmatpush.msra.mxu0 %v94
    %453 = vmatpush.msra.mxu0 %v80
    %454 = vmatpush.msra.mxu0 %v66
    %455 = vmatmul.f32.gmra.mxu0 %v154
    %v456 = vpop.f32.mrf.mxu0
    %v457 = vadd.f32 0.0, %v456
    %458 = vdwg.mxu0
    %459 = vmatpush.msra.mxu0 0.0
    %460 = vmatpush.msra.mxu0 0.0
    %461 = vmatpush.msra.mxu0 0.0
    %462 = vmatpush.msra.mxu0 0.0
    %463 = vmatpush.msra.mxu0 0.0
    %464 = vmatpush.msra.mxu0 0.0
    %465 = vmatpush.msra.mxu0 0.0
    %466 = vmatpush.msra.mxu0 0.0
    %467 = vmatpush.msra.mxu0 0.0
    %468 = vmatpush.msra.mxu0 %v197
    %469 = vmatpush.msra.mxu0 %v137
    %470 = vmatpush.msra.mxu0 %v123
    %471 = vmatpush.msra.mxu0 %v109
    %472 = vmatpush.msra.mxu0 %v95
    %473 = vmatpush.msra.mxu0 %v81
    %474 = vmatpush.msra.mxu0 %v67
    %475 = vmatmul.f32.gmra.mxu0 %v154
    %v476 = vpop.f32.mrf.mxu0
    %v477 = vadd.f32 0.0, %v476
    %478 = vdwg.mxu0
    %v479 = vxor.u32 %v217, 2147483648
    %v480 = vmul.f32 %v479, 1.442695
    %v481 = vpow.pop %v480
    %v482 = vadd.f32 %v481, 1.0
    %v483 = vrcp.pop %v482
    %v484 = vmul.f32 %v482, %v483
    %v485 = vsub.f32 1.0, %v484
    %v486 = vmul.f32 %v483, %v485
    %v487 = vadd.f32 %v483, %v486
    %vm488 = vweird.f32 %v482
    %vm489 = vweird.f32 %v483
    %vm490 = vmor %vm488, %vm489
    %v491 = vsel %vm490, %v483, %v487
    %v492 = vand.u32 2147483647, %v482
    %vm493 = vcmp.eq.f32.partialorder %v492, 8.507059e+37
    %v494 = vand.u32 %v482, 2147483648
    %v495 = vor.u32 1.1754944e-38, %v494
    %v496 = vsel %vm493, %v495, %v491
    %v497 = vmul.f32 1.0, %v496
    %v498 = vtanh.pop %v217
    %500 = vrot.lane.b32.xlu0 %v237, 112
    %v501 = vpop.permute.xlu0 %500
    %503 = vrot.lane.b32.xlu0 %v237, 96
    %v504 = vpop.permute.xlu0 %503
    %506 = vrot.lane.b32.xlu0 %v237, 80
    %v507 = vpop.permute.xlu0 %506
    %509 = vrot.lane.b32.xlu0 %v237, 64
    %v510 = vpop.permute.xlu0 %509
    %512 = vrot.lane.b32.xlu0 %v237, 48
    %v513 = vpop.permute.xlu0 %512
    %515 = vrot.lane.b32.xlu0 %v237, 32
    %v516 = vpop.permute.xlu0 %515
    %518 = vrot.lane.b32.xlu0 %v237, 16
    %v519 = vpop.permute.xlu0 %518
    %522 = vrot.lane.b32.xlu0 %v257, 112
    %v523 = vpop.permute.xlu0 %522
    %525 = vrot.lane.b32.xlu0 %v257, 96
    %v526 = vpop.permute.xlu0 %525
    %528 = vrot.lane.b32.xlu0 %v257, 80
    %v529 = vpop.permute.xlu0 %528
    %531 = vrot.lane.b32.xlu0 %v257, 64
    %v532 = vpop.permute.xlu0 %531
    %534 = vrot.lane.b32.xlu0 %v257, 48
    %v535 = vpop.permute.xlu0 %534
    %537 = vrot.lane.b32.xlu0 %v257, 32
    %v538 = vpop.permute.xlu0 %537
    %540 = vrot.lane.b32.xlu0 %v257, 16
    %v541 = vpop.permute.xlu0 %540
    %544 = vrot.lane.b32.xlu0 %v277, 112
    %v545 = vpop.permute.xlu0 %544
    %547 = vrot.lane.b32.xlu0 %v277, 96
    %v548 = vpop.permute.xlu0 %547
    %550 = vrot.lane.b32.xlu0 %v277, 80
    %v551 = vpop.permute.xlu0 %550
    %553 = vrot.lane.b32.xlu0 %v277, 64
    %v554 = vpop.permute.xlu0 %553
    %556 = vrot.lane.b32.xlu0 %v277, 48
    %v557 = vpop.permute.xlu0 %556
    %559 = vrot.lane.b32.xlu0 %v277, 32
    %v560 = vpop.permute.xlu0 %559
    %562 = vrot.lane.b32.xlu0 %v277, 16
    %v563 = vpop.permute.xlu0 %562
    %566 = vrot.lane.b32.xlu0 %v297, 112
    %v567 = vpop.permute.xlu0 %566
    %569 = vrot.lane.b32.xlu0 %v297, 96
    %v570 = vpop.permute.xlu0 %569
    %572 = vrot.lane.b32.xlu0 %v297, 80
    %v573 = vpop.permute.xlu0 %572
    %575 = vrot.lane.b32.xlu0 %v297, 64
    %v576 = vpop.permute.xlu0 %575
    %578 = vrot.lane.b32.xlu0 %v297, 48
    %v579 = vpop.permute.xlu0 %578
    %581 = vrot.lane.b32.xlu0 %v297, 32
    %v582 = vpop.permute.xlu0 %581
    %584 = vrot.lane.b32.xlu0 %v297, 16
    %v585 = vpop.permute.xlu0 %584
    %v587 = vrot.slane %v504, 4
    %vm588 = vcmask 1047556
    %v589 = vsel %vm588, %v587, %v237
    %v591 = vunpack.c.l.s4 1983009808
    %v592 = vunpack.c.0.s8 %v591
    %v593 = vperm.slane %v589, %v592
    %v594 = vrot.slane %v507, 4
    %v595 = vsel %vm588, %v594, %v501
    %v597 = vunpack.c.l.s4 1983009808
    %v598 = vunpack.c.0.s8 %v597
    %v599 = vperm.slane %v595, %v598
    %v600 = vrot.slane %v516, 4
    %v601 = vsel %vm588, %v600, %v510
    %v603 = vunpack.c.l.s4 1983009808
    %v604 = vunpack.c.0.s8 %v603
    %v605 = vperm.slane %v601, %v604
    %v606 = vrot.slane %v519, 4
    %v607 = vsel %vm588, %v606, %v513
    %v609 = vunpack.c.l.s4 1983009808
    %v610 = vunpack.c.0.s8 %v609
    %v611 = vperm.slane %v607, %v610
    %v612 = vrot.slane %v599, 4
    %v613 = vsel %vm588, %v612, %v593
    %v615 = vunpack.c.l.s4 1934713408
    %v616 = vunpack.c.0.s8 %v615
    %v617 = vperm.slane %v613, %v616
    %v618 = vrot.slane %v611, 4
    %v619 = vsel %vm588, %v618, %v605
    %v621 = vunpack.c.l.s4 1934713408
    %v622 = vunpack.c.0.s8 %v621
    %v623 = vperm.slane %v619, %v622
    %v624 = vrot.slane %v623, 4
    %v625 = vsel %vm588, %v624, %v617
    %v626 = vrot.slane %v526, 4
    %v627 = vsel %vm588, %v626, %v257
    %v629 = vunpack.c.l.s4 1983009808
    %v630 = vunpack.c.0.s8 %v629
    %v631 = vperm.slane %v627, %v630
    %v632 = vrot.slane %v529, 4
    %v633 = vsel %vm588, %v632, %v523
    %v635 = vunpack.c.l.s4 1983009808
    %v636 = vunpack.c.0.s8 %v635
    %v637 = vperm.slane %v633, %v636
    %v638 = vrot.slane %v538, 4
    %v639 = vsel %vm588, %v638, %v532
    %v641 = vunpack.c.l.s4 1983009808
    %v642 = vunpack.c.0.s8 %v641
    %v643 = vperm.slane %v639, %v642
    %v644 = vrot.slane %v541, 4
    %v645 = vsel %vm588, %v644, %v535
    %v647 = vunpack.c.l.s4 1983009808
    %v648 = vunpack.c.0.s8 %v647
    %v649 = vperm.slane %v645, %v648
    %v650 = vrot.slane %v637, 4
    %v651 = vsel %vm588, %v650, %v631
    %v653 = vunpack.c.l.s4 1934713408
    %v654 = vunpack.c.0.s8 %v653
    %v655 = vperm.slane %v651, %v654
    %v656 = vrot.slane %v649, 4
    %v657 = vsel %vm588, %v656, %v643
    %v659 = vunpack.c.l.s4 1934713408
    %v660 = vunpack.c.0.s8 %v659
    %v661 = vperm.slane %v657, %v660
    %v662 = vrot.slane %v661, 4
    %v663 = vsel %vm588, %v662, %v655
    %v664 = vrot.slane %v548, 4
    %v665 = vsel %vm588, %v664, %v277
    %v667 = vunpack.c.l.s4 1983009808
    %v668 = vunpack.c.0.s8 %v667
    %v669 = vperm.slane %v665, %v668
    %v670 = vrot.slane %v551, 4
    %v671 = vsel %vm588, %v670, %v545
    %v673 = vunpack.c.l.s4 1983009808
    %v674 = vunpack.c.0.s8 %v673
    %v675 = vperm.slane %v671, %v674
    %v676 = vrot.slane %v560, 4
    %v677 = vsel %vm588, %v676, %v554
    %v679 = vunpack.c.l.s4 1983009808
    %v680 = vunpack.c.0.s8 %v679
    %v681 = vperm.slane %v677, %v680
    %v682 = vrot.slane %v563, 4
    %v683 = vsel %vm588, %v682, %v557
    %v685 = vunpack.c.l.s4 1983009808
    %v686 = vunpack.c.0.s8 %v685
    %v687 = vperm.slane %v683, %v686
    %v688 = vrot.slane %v675, 4
    %v689 = vsel %vm588, %v688, %v669
    %v691 = vunpack.c.l.s4 1934713408
    %v692 = vunpack.c.0.s8 %v691
    %v693 = vperm.slane %v689, %v692
    %v694 = vrot.slane %v687, 4
    %v695 = vsel %vm588, %v694, %v681
    %v697 = vunpack.c.l.s4 1934713408
    %v698 = vunpack.c.0.s8 %v697
    %v699 = vperm.slane %v695, %v698
    %v700 = vrot.slane %v699, 4
    %v701 = vsel %vm588, %v700, %v693
    %v702 = vrot.slane %v570, 4
    %v703 = vsel %vm588, %v702, %v297
    %v705 = vunpack.c.l.s4 1983009808
    %v706 = vunpack.c.0.s8 %v705
    %v707 = vperm.slane %v703, %v706
    %v708 = vrot.slane %v573, 4
    %v709 = vsel %vm588, %v708, %v567
    %v711 = vunpack.c.l.s4 1983009808
    %v712 = vunpack.c.0.s8 %v711
    %v713 = vperm.slane %v709, %v712
    %v714 = vrot.slane %v582, 4
    %v715 = vsel %vm588, %v714, %v576
    %v717 = vunpack.c.l.s4 1983009808
    %v718 = vunpack.c.0.s8 %v717
    %v719 = vperm.slane %v715, %v718
    %v720 = vrot.slane %v585, 4
    %v721 = vsel %vm588, %v720, %v579
    %v723 = vunpack.c.l.s4 1983009808
    %v724 = vunpack.c.0.s8 %v723
    %v725 = vperm.slane %v721, %v724
    %v726 = vrot.slane %v713, 4
    %v727 = vsel %vm588, %v726, %v707
    %v729 = vunpack.c.l.s4 1934713408
    %v730 = vunpack.c.0.s8 %v729
    %v731 = vperm.slane %v727, %v730
    %v732 = vrot.slane %v725, 4
    %v733 = vsel %vm588, %v732, %v719
    %v735 = vunpack.c.l.s4 1934713408
    %v736 = vunpack.c.0.s8 %v735
    %v737 = vperm.slane %v733, %v736
    %v738 = vrot.slane %v737, 4
    %v739 = vsel %vm588, %v738, %v731
    %741 = vrot.lane.b32.xlu0 %v317, 96
    %v742 = vpop.permute.xlu0 %741
    %744 = vrot.lane.b32.xlu0 %v317, 64
    %v745 = vpop.permute.xlu0 %744
    %747 = vrot.lane.b32.xlu0 %v317, 32
    %v748 = vpop.permute.xlu0 %747
    %751 = vrot.lane.b32.xlu0 %v337, 96
    %v752 = vpop.permute.xlu0 %751
    %754 = vrot.lane.b32.xlu0 %v337, 64
    %v755 = vpop.permute.xlu0 %754
    %757 = vrot.lane.b32.xlu0 %v337, 32
    %v758 = vpop.permute.xlu0 %757
    %761 = vrot.lane.b32.xlu0 %v357, 96
    %v762 = vpop.permute.xlu0 %761
    %764 = vrot.lane.b32.xlu0 %v357, 64
    %v765 = vpop.permute.xlu0 %764
    %767 = vrot.lane.b32.xlu0 %v357, 32
    %v768 = vpop.permute.xlu0 %767
    %771 = vrot.lane.b32.xlu0 %v377, 96
    %v772 = vpop.permute.xlu0 %771
    %774 = vrot.lane.b32.xlu0 %v377, 64
    %v775 = vpop.permute.xlu0 %774
    %777 = vrot.lane.b32.xlu0 %v377, 32
    %v778 = vpop.permute.xlu0 %777
    %781 = vrot.lane.b32.xlu0 %v397, 96
    %v782 = vpop.permute.xlu0 %781
    %784 = vrot.lane.b32.xlu0 %v397, 64
    %v785 = vpop.permute.xlu0 %784
    %787 = vrot.lane.b32.xlu0 %v397, 32
    %v788 = vpop.permute.xlu0 %787
    %791 = vrot.lane.b32.xlu0 %v417, 96
    %v792 = vpop.permute.xlu0 %791
    %794 = vrot.lane.b32.xlu0 %v417, 64
    %v795 = vpop.permute.xlu0 %794
    %797 = vrot.lane.b32.xlu0 %v417, 32
    %v798 = vpop.permute.xlu0 %797
    %801 = vrot.lane.b32.xlu0 %v437, 96
    %v802 = vpop.permute.xlu0 %801
    %804 = vrot.lane.b32.xlu0 %v437, 64
    %v805 = vpop.permute.xlu0 %804
    %807 = vrot.lane.b32.xlu0 %v437, 32
    %v808 = vpop.permute.xlu0 %807
    %811 = vrot.lane.b32.xlu0 %v457, 96
    %v812 = vpop.permute.xlu0 %811
    %814 = vrot.lane.b32.xlu0 %v457, 64
    %v815 = vpop.permute.xlu0 %814
    %817 = vrot.lane.b32.xlu0 %v457, 32
    %v818 = vpop.permute.xlu0 %817
    %v820 = vrot.slane %v745, 4
    %v821 = vsel %vm588, %v820, %v317
    %v823 = vunpack.c.l.s4 1983009808
    %v824 = vunpack.c.0.s8 %v823
    %v825 = vperm.slane %v821, %v824
    %v826 = vrot.slane %v748, 4
    %v827 = vsel %vm588, %v826, %v742
    %v829 = vunpack.c.l.s4 1983009808
    %v830 = vunpack.c.0.s8 %v829
    %v831 = vperm.slane %v827, %v830
    %v832 = vrot.slane %v755, 4
    %v833 = vsel %vm588, %v832, %v337
    %v835 = vunpack.c.l.s4 1983009808
    %v836 = vunpack.c.0.s8 %v835
    %v837 = vperm.slane %v833, %v836
    %v838 = vrot.slane %v758, 4
    %v839 = vsel %vm588, %v838, %v752
    %v841 = vunpack.c.l.s4 1983009808
    %v842 = vunpack.c.0.s8 %v841
    %v843 = vperm.slane %v839, %v842
    %v844 = vrot.slane %v831, 4
    %v845 = vsel %vm588, %v844, %v825
    %v847 = vunpack.c.l.s4 1934713408
    %v848 = vunpack.c.0.s8 %v847
    %v849 = vperm.slane %v845, %v848
    %v850 = vrot.slane %v843, 4
    %v851 = vsel %vm588, %v850, %v837
    %v853 = vunpack.c.l.s4 1934713408
    %v854 = vunpack.c.0.s8 %v853
    %v855 = vperm.slane %v851, %v854
    %v856 = vrot.slane %v855, 4
    %v857 = vsel %vm588, %v856, %v849
    %v858 = vrot.slane %v765, 4
    %v859 = vsel %vm588, %v858, %v357
    %v861 = vunpack.c.l.s4 1983009808
    %v862 = vunpack.c.0.s8 %v861
    %v863 = vperm.slane %v859, %v862
    %v864 = vrot.slane %v768, 4
    %v865 = vsel %vm588, %v864, %v762
    %v867 = vunpack.c.l.s4 1983009808
    %v868 = vunpack.c.0.s8 %v867
    %v869 = vperm.slane %v865, %v868
    %v870 = vrot.slane %v775, 4
    %v871 = vsel %vm588, %v870, %v377
    %v873 = vunpack.c.l.s4 1983009808
    %v874 = vunpack.c.0.s8 %v873
    %v875 = vperm.slane %v871, %v874
    %v876 = vrot.slane %v778, 4
    %v877 = vsel %vm588, %v876, %v772
    %v879 = vunpack.c.l.s4 1983009808
    %v880 = vunpack.c.0.s8 %v879
    %v881 = vperm.slane %v877, %v880
    %v882 = vrot.slane %v869, 4
    %v883 = vsel %vm588, %v882, %v863
    %v885 = vunpack.c.l.s4 1934713408
    %v886 = vunpack.c.0.s8 %v885
    %v887 = vperm.slane %v883, %v886
    %v888 = vrot.slane %v881, 4
    %v889 = vsel %vm588, %v888, %v875
    %v891 = vunpack.c.l.s4 1934713408
    %v892 = vunpack.c.0.s8 %v891
    %v893 = vperm.slane %v889, %v892
    %v894 = vrot.slane %v893, 4
    %v895 = vsel %vm588, %v894, %v887
    %v896 = vrot.slane %v785, 4
    %v897 = vsel %vm588, %v896, %v397
    %v899 = vunpack.c.l.s4 1983009808
    %v900 = vunpack.c.0.s8 %v899
    %v901 = vperm.slane %v897, %v900
    %v902 = vrot.slane %v788, 4
    %v903 = vsel %vm588, %v902, %v782
    %v905 = vunpack.c.l.s4 1983009808
    %v906 = vunpack.c.0.s8 %v905
    %v907 = vperm.slane %v903, %v906
    %v908 = vrot.slane %v795, 4
    %v909 = vsel %vm588, %v908, %v417
    %v911 = vunpack.c.l.s4 1983009808
    %v912 = vunpack.c.0.s8 %v911
    %v913 = vperm.slane %v909, %v912
    %v914 = vrot.slane %v798, 4
    %v915 = vsel %vm588, %v914, %v792
    %v917 = vunpack.c.l.s4 1983009808
    %v918 = vunpack.c.0.s8 %v917
    %v919 = vperm.slane %v915, %v918
    %v920 = vrot.slane %v907, 4
    %v921 = vsel %vm588, %v920, %v901
    %v923 = vunpack.c.l.s4 1934713408
    %v924 = vunpack.c.0.s8 %v923
    %v925 = vperm.slane %v921, %v924
    %v926 = vrot.slane %v919, 4
    %v927 = vsel %vm588, %v926, %v913
    %v929 = vunpack.c.l.s4 1934713408
    %v930 = vunpack.c.0.s8 %v929
    %v931 = vperm.slane %v927, %v930
    %v932 = vrot.slane %v931, 4
    %v933 = vsel %vm588, %v932, %v925
    %v934 = vrot.slane %v805, 4
    %v935 = vsel %vm588, %v934, %v437
    %v937 = vunpack.c.l.s4 1983009808
    %v938 = vunpack.c.0.s8 %v937
    %v939 = vperm.slane %v935, %v938
    %v940 = vrot.slane %v808, 4
    %v941 = vsel %vm588, %v940, %v802
    %v943 = vunpack.c.l.s4 1983009808
    %v944 = vunpack.c.0.s8 %v943
    %v945 = vperm.slane %v941, %v944
    %v946 = vrot.slane %v815, 4
    %v947 = vsel %vm588, %v946, %v457
    %v949 = vunpack.c.l.s4 1983009808
    %v950 = vunpack.c.0.s8 %v949
    %v951 = vperm.slane %v947, %v950
    %v952 = vrot.slane %v818, 4
    %v953 = vsel %vm588, %v952, %v812
    %v955 = vunpack.c.l.s4 1983009808
    %v956 = vunpack.c.0.s8 %v955
    %v957 = vperm.slane %v953, %v956
    %v958 = vrot.slane %v945, 4
    %v959 = vsel %vm588, %v958, %v939
    %v961 = vunpack.c.l.s4 1934713408
    %v962 = vunpack.c.0.s8 %v961
    %v963 = vperm.slane %v959, %v962
    %v964 = vrot.slane %v957, 4
    %v965 = vsel %vm588, %v964, %v951
    %v967 = vunpack.c.l.s4 1934713408
    %v968 = vunpack.c.0.s8 %v967
    %v969 = vperm.slane %v965, %v968
    %v970 = vrot.slane %v969, 4
    %v971 = vsel %vm588, %v970, %v963
    %v973 = vperm.slane %v42, 0
    %v975 = vmul.f32 %v625, %v973
    %v976 = vmul.f32 %v663, %v973
    %v977 = vmul.f32 %v701, %v973
    %v978 = vmul.f32 %v739, %v973
    %v979 = vsel %vm50, %v975, 0.0
    %980 = vadd.xlane.f32.xlu0 %v979
    %v981 = vpop.xlane.xlu0 %980
    %v982 = vsel %vm50, %v976, 0.0
    %983 = vadd.xlane.f32.xlu0 %v982
    %v984 = vpop.xlane.xlu0 %983
    %v985 = vsel %vm50, %v977, 0.0
    %986 = vadd.xlane.f32.xlu0 %v985
    %v987 = vpop.xlane.xlu0 %986
    %v988 = vsel %vm50, %v978, 0.0
    %989 = vadd.xlane.f32.xlu0 %v988
    %v990 = vpop.xlane.xlu0 %989
    %v992 = vmul.f32 %v857, %v46
    %v993 = vmul.f32 %v895, %v46
    %v994 = vmul.f32 %v933, %v46
    %v995 = vmul.f32 %v971, %v46
    %vm996 = vcmask 261120
    %v997 = vsel %vm996, %v992, 0.0
    %998 = vadd.xlane.f32.xlu0 %v997
    %v999 = vpop.xlane.xlu0 %998
    %v1000 = vsel %vm996, %v993, 0.0
    %1001 = vadd.xlane.f32.xlu0 %v1000
    %v1002 = vpop.xlane.xlu0 %1001
    %v1003 = vsel %vm996, %v994, 0.0
    %1004 = vadd.xlane.f32.xlu0 %v1003
    %v1005 = vpop.xlane.xlu0 %1004
    %v1006 = vsel %vm996, %v995, 0.0
    %1007 = vadd.xlane.f32.xlu0 %v1006
    %v1008 = vpop.xlane.xlu0 %1007
    %v1009 = vadd.f32 %v981, %v999
    %v1010 = vadd.f32 %v984, %v1002
    %v1011 = vadd.f32 %v987, %v1005
    %v1012 = vadd.f32 %v990, %v1008
    %v1014 = vperm.slane %v477, 0
    %v1015 = vlaneseq
    %v1016 = vshrl.u32 %v1015, 7
    %1018 = vset.pattern.permute.xlu0 %v1016
    %1019 = vperm.xlu0 %1018, %v1014
    %v1020 = vpop.permute.xlu0 %1019
    %v1021 = vlaneseq
    %v1022 = vshrl.u32 %v1021, 7
    %v1023 = vadd.s32 %v1022, 8
    %1024 = vset.pattern.permute.xlu0 %v1023
    %1025 = vperm.xlu0 %1024, %v1014
    %v1026 = vpop.permute.xlu0 %1025
    %v1027 = vlaneseq
    %v1028 = vshrl.u32 %v1027, 7
    %v1029 = vadd.s32 %v1028, 16
    %1030 = vset.pattern.permute.xlu0 %v1029
    %1031 = vperm.xlu0 %1030, %v1014
    %v1032 = vpop.permute.xlu0 %1031
    %v1033 = vlaneseq
    %v1034 = vshrl.u32 %v1033, 7
    %v1035 = vadd.s32 %v1034, 24
    %1036 = vset.pattern.permute.xlu0 %v1035
    %1037 = vperm.xlu0 %1036, %v1014
    %v1038 = vpop.permute.xlu0 %1037
    %v1043 = vadd.f32 %v1009, %v1020
    %v1044 = vadd.f32 %v1010, %v1026
    %v1045 = vadd.f32 %v1011, %v1032
    %v1046 = vadd.f32 %v1012, %v1038
    %v1047 = vxor.u32 %v1043, 2147483648
    %v1048 = vxor.u32 %v1044, 2147483648
    %v1049 = vxor.u32 %v1045, 2147483648
    %v1050 = vxor.u32 %v1046, 2147483648
    %v1051 = vmul.f32 %v1047, 1.442695
    %v1052 = vpow.pop %v1051
    %v1053 = vmul.f32 %v1048, 1.442695
    %v1054 = vpow.pop %v1053
    %v1055 = vmul.f32 %v1049, 1.442695
    %v1056 = vpow.pop %v1055
    %v1057 = vmul.f32 %v1050, 1.442695
    %v1058 = vpow.pop %v1057
    %v1059 = vadd.f32 %v1052, 1.0
    %v1060 = vadd.f32 %v1054, 1.0
    %v1061 = vadd.f32 %v1056, 1.0
    %v1062 = vadd.f32 %v1058, 1.0
    %v1063 = vrcp.pop %v1059
    %v1064 = vmul.f32 %v1059, %v1063
    %v1065 = vsub.f32 1.0, %v1064
    %v1066 = vmul.f32 %v1063, %v1065
    %v1067 = vadd.f32 %v1063, %v1066
    %vm1068 = vweird.f32 %v1059
    %vm1069 = vweird.f32 %v1063
    %vm1070 = vmor %vm1068, %vm1069
    %v1071 = vsel %vm1070, %v1063, %v1067
    %v1072 = vand.u32 2147483647, %v1059
    %vm1073 = vcmp.eq.f32.partialorder %v1072, 8.507059e+37
    %v1074 = vand.u32 %v1059, 2147483648
    %v1075 = vor.u32 1.1754944e-38, %v1074
    %v1076 = vsel %vm1073, %v1075, %v1071
    %v1077 = vmul.f32 1.0, %v1076
    %v1078 = vrcp.pop %v1060
    %v1079 = vmul.f32 %v1060, %v1078
    %v1080 = vsub.f32 1.0, %v1079
    %v1081 = vmul.f32 %v1078, %v1080
    %v1082 = vadd.f32 %v1078, %v1081
    %vm1083 = vweird.f32 %v1060
    %vm1084 = vweird.f32 %v1078
    %vm1085 = vmor %vm1083, %vm1084
    %v1086 = vsel %vm1085, %v1078, %v1082
    %v1087 = vand.u32 2147483647, %v1060
    %vm1088 = vcmp.eq.f32.partialorder %v1087, 8.507059e+37
    %v1089 = vand.u32 %v1060, 2147483648
    %v1090 = vor.u32 1.1754944e-38, %v1089
    %v1091 = vsel %vm1088, %v1090, %v1086
    %v1092 = vmul.f32 1.0, %v1091
    %v1093 = vrcp.pop %v1061
    %v1094 = vmul.f32 %v1061, %v1093
    %v1095 = vsub.f32 1.0, %v1094
    %v1096 = vmul.f32 %v1093, %v1095
    %v1097 = vadd.f32 %v1093, %v1096
    %vm1098 = vweird.f32 %v1061
    %vm1099 = vweird.f32 %v1093
    %vm1100 = vmor %vm1098, %vm1099
    %v1101 = vsel %vm1100, %v1093, %v1097
    %v1102 = vand.u32 2147483647, %v1061
    %vm1103 = vcmp.eq.f32.partialorder %v1102, 8.507059e+37
    %v1104 = vand.u32 %v1061, 2147483648
    %v1105 = vor.u32 1.1754944e-38, %v1104
    %v1106 = vsel %vm1103, %v1105, %v1101
    %v1107 = vmul.f32 1.0, %v1106
    %v1108 = vrcp.pop %v1062
    %v1109 = vmul.f32 %v1062, %v1108
    %v1110 = vsub.f32 1.0, %v1109
    %v1111 = vmul.f32 %v1108, %v1110
    %v1112 = vadd.f32 %v1108, %v1111
    %vm1113 = vweird.f32 %v1062
    %vm1114 = vweird.f32 %v1108
    %vm1115 = vmor %vm1113, %vm1114
    %v1116 = vsel %vm1115, %v1108, %v1112
    %v1117 = vand.u32 2147483647, %v1062
    %vm1118 = vcmp.eq.f32.partialorder %v1117, 8.507059e+37
    %v1119 = vand.u32 %v1062, 2147483648
    %v1120 = vor.u32 1.1754944e-38, %v1119
    %v1121 = vsel %vm1118, %v1120, %v1116
    %v1122 = vmul.f32 1.0, %v1121
    %1127 = vset.pattern.permute.xlu0 0
    %1128 = vperm.xlu0 %1127, %v1077
    %v1129 = vpop.permute.xlu0 %1128
    %1130 = vset.pattern.permute.xlu0 0
    %1131 = vperm.xlu0 %1130, %v1092
    %v1132 = vpop.permute.xlu0 %1131
    %1133 = vset.pattern.permute.xlu0 0
    %1134 = vperm.xlu0 %1133, %v1107
    %v1135 = vpop.permute.xlu0 %1134
    %1136 = vset.pattern.permute.xlu0 0
    %1137 = vperm.xlu0 %1136, %v1122
    %v1138 = vpop.permute.xlu0 %1137
    %v1139 = vlaneseq
    %v1140 = vand.u32 %v1139, 127
    %v1141 = vperm.slane %v1129, %v1140
    %v1142 = vadd.s32 %v1140, 4294967288
    %v1143 = vperm.slane %v1132, %v1142
    %vm1144 = vcmask 130112
    %v1145 = vsel %vm1144, %v1143, %v1141
    %v1146 = vadd.s32 %v1140, 4294967280
    %v1147 = vperm.slane %v1135, %v1146
    %vm1148 = vcmask 195712
    %v1149 = vsel %vm1148, %v1147, %v1145
    %v1150 = vadd.s32 %v1140, 4294967272
    %v1151 = vperm.slane %v1138, %v1150
    %vm1152 = vcmask 261312
    %v1153 = vsel %vm1152, %v1151, %v1149
    %v1155 = vmul.f32 %v497, %v1153
    %v1156 = vmul.f32 %v1155, %v44
    %1158 = vrot.lane.b32.xlu0 %v498, 64
    %v1159 = vpop.permute.xlu0 %1158
    %v1161 = vmul.f32 %v497, %v1159
    %1163 = vrot.lane.b32.xlu0 %v1161, 96
    %v1164 = vpop.permute.xlu0 %1163
    %v1166 = vadd.f32 %v1156, %v1164
    %v1167 = vtanh.pop %v1166
    %1169 = vrot.lane.b32.xlu0 %v1167, 64
    %v1170 = vpop.permute.xlu0 %1169
    %v1172 = vmul.f32 %v497, %v1170
    %1174 = vrot.lane.b32.xlu0 %v1172, 64
    %v1175 = vpop.permute.xlu0 %1174
    %vm1177 = vcmask 253952
    %1178 = vst.msk [vmem:[#allocation2] sm:$0x1] %vm1177, %v1175
    %1179 = vst.msk [vmem:[#allocation3] sm:$0x1] %vm1177, %v1166
    %1181 = vrot.lane.b32.xlu0 %v1166, 32
    %v1182 = vpop.permute.xlu0 %1181
    %v1184 = vsel %vm996, %v1175, %v1182
    %vm1185 = vcmask 516096
    %1186 = vst.msk [vmem:[%s4] sm:$0x1] %vm1185, %v1184
    // Predicated region
    $region26: #{smlstm_forward.1} parent=1 // pred_check
      _
    $region27: #{smlstm_forward.1} parent=1 // pred_check_branch
      %1188 = sbr.rel (0) target = $region29
    $region28: #{smlstm_forward.1} parent=1 // pred_region
      _
    $region29: #{smlstm_forward.1} parent=1 // pred_fallthru
      _
    // Predicated region
    $region30: #{smlstm_forward.1} parent=1 // pred_check
      _
    $region31: #{smlstm_forward.1} parent=1 // pred_check_branch
      %1190 = sbr.rel (0) target = $region33
    $region32: #{smlstm_forward.1} parent=1 // pred_region
      _
    $region33: #{smlstm_forward.1} parent=1 // pred_fallthru
      _
    %1191 = vsyncpa [#allocation5], 1

</llo_original>
